<compile_context>
chip_gen: v7x
topology: tpu7x:2x2x1
jax: 0.10.0
libtpu: 0.0.40
codegen_flags: <defaults>
</compile_context>

<pallas_src>
from functools import partial

import jax
import jax.numpy as jnp
from jax.experimental import pallas as pl
from jax.experimental.pallas import tpu as pltpu

LANES = 128
MAX_LANE_WIDTH = 8192              # widest slab width we try (64 * 128 lanes)
TARGET_BLOCK_BYTES = 2 << 20       # ~2 MiB per operand block (large path)
FAST_PATH_MAX_BYTES = 4 << 20      # whole-slab-in-VMEM fast path threshold
VMEM_LIMIT_BYTES = 32 << 20        # explicit scoped-VMEM budget


def _fused_small_kernel(x_ref, g_ref, o_ref, *, std):
    """Single-block fast path: min/max + noise add + clamp in one body."""
    xf = x_ref[...].astype(jnp.float32)
    mn = jnp.min(xf, keepdims=True)            # (1, 1)
    mx = jnp.max(xf, keepdims=True)            # (1, 1)
    y = xf + jnp.float32(std) * g_ref[...]
    o_ref[...] = jnp.clip(y, mn, mx).astype(o_ref.dtype)


def _fused_kernel(x_ref, g_ref, o_ref, min_acc, max_acc, mn_scr, mx_scr, *, std):
    """Fused two-pass kernel over grid=(2, num_blocks).

    pass p==0: fold global min/max into VMEM accumulators (VPU), single XLU
               reduce into (1,1) scratch on the last block.
    pass p==1: o = clamp(x + std * g, global_min, global_max).
    """
    p = pl.program_id(0)
    i = pl.program_id(1)

    @pl.when(p == 0)
    def _():
        @pl.when(i == 0)
        def _():
            min_acc[...] = jnp.full(min_acc.shape, jnp.inf, dtype=jnp.float32)
            max_acc[...] = jnp.full(max_acc.shape, -jnp.inf, dtype=jnp.float32)

        br, w = x_ref.shape
        ar = min_acc.shape[0]
        # Regroups whole (8,128) tiles -> stays a view; elementwise fold only.
        x = x_ref[...].astype(jnp.float32).reshape(br // ar, ar, w)
        min_acc[...] = jnp.minimum(min_acc[...], jnp.min(x, axis=0))
        max_acc[...] = jnp.maximum(max_acc[...], jnp.max(x, axis=0))

        @pl.when(i == pl.num_programs(1) - 1)
        def _():
            mn_scr[...] = jnp.min(min_acc[...], keepdims=True)
            mx_scr[...] = jnp.max(max_acc[...], keepdims=True)

    @pl.when(p == 1)
    def _():
        y = x_ref[...].astype(jnp.float32) + jnp.float32(std) * g_ref[...]
        o_ref[...] = jnp.clip(y, mn_scr[...], mx_scr[...]).astype(o_ref.dtype)


def _largest_divisor(rows, sub, max_rows):
    """Largest divisor of `rows` that is a multiple of `sub` and <= max_rows."""
    for d in range(min(max_rows, rows), sub - 1, -1):
        if rows % d == 0 and d % sub == 0:
            return d
    return None


def gaussian_noise_forward(x, std, seed=0):
    """Pallas implementation of GaussianNoise.forward (any shape, float dtype)."""
    orig_shape = x.shape
    dtype = x.dtype
    n = x.size
    itemsize = jnp.dtype(dtype).itemsize
    # minimum packed sublane multiple: f32 -> 8, bf16 -> 16, int8/fp8 -> 32
    sub = max(8, 32 // itemsize)

    # --- choose a lane-dense slab (rows, W) ---------------------------------
    n128 = -(-n // LANES) * LANES
    W = LANES
    for cand in range(min(MAX_LANE_WIDTH, n128), LANES - 1, -LANES):
        if n128 % cand == 0:
            W = cand
            break
    rows = n128 // W

    flat = x.reshape(-1)
    if n128 != n:
        # Edge padding replicates existing values -> cannot perturb min/max.
        flat = jnp.pad(flat, (0, n128 - n), mode="edge")

    slab_bytes = rows * W * itemsize
    compiler_params_1d = pltpu.CompilerParams(
        dimension_semantics=("arbitrary",), vmem_limit_bytes=VMEM_LIMIT_BYTES)

    if slab_bytes <= FAST_PATH_MAX_BYTES:
        # ---- fast path: whole slab fits in VMEM, single launch -------------
        x2 = flat.reshape(rows, W)
        g2 = jax.random.normal(jax.random.PRNGKey(seed), (rows, W), jnp.float32)
        out2 = pl.pallas_call(
            partial(_fused_small_kernel, std=float(std)),
            out_shape=jax.ShapeDtypeStruct((rows, W), dtype),
            grid=(1,),
            in_specs=[
                pl.BlockSpec((rows, W), lambda i: (0, 0)),
                pl.BlockSpec((rows, W), lambda i: (0, 0)),
            ],
            out_specs=pl.BlockSpec((rows, W), lambda i: (0, 0)),
            compiler_params=compiler_params_1d,
        )(x2, g2)
    else:
        # ---- large path: fused two-pass kernel ------------------------------
        target_rows = max(sub, (TARGET_BLOCK_BYTES // (W * itemsize)) // sub * sub)
        block_rows = _largest_divisor(rows, sub, target_rows)
        if block_rows is None:
            # Rare fallback: round rows up to a block multiple (edge pad).
            block_rows = target_rows
            new_rows = -(-rows // block_rows) * block_rows
            flat = jnp.pad(flat, (0, (new_rows - rows) * W), mode="edge")
            rows = new_rows
        num_blocks = rows // block_rows
        acc_rows = 8 if block_rows % 8 == 0 else block_rows

        x2 = flat.reshape(rows, W)
        g2 = jax.random.normal(jax.random.PRNGKey(seed), (rows, W), jnp.float32)

        out2 = pl.pallas_call(
            partial(_fused_kernel, std=float(std)),
            out_shape=jax.ShapeDtypeStruct((rows, W), dtype),
            grid=(2, num_blocks),
            in_specs=[
                # x: re-read in both passes (needed for min/max then add).
                pl.BlockSpec((block_rows, W), lambda p, i: (i, 0)),
                # noise: only advances during pass 1 (p*i stays 0 in pass 0).
                pl.BlockSpec((block_rows, W), lambda p, i: (p * i, 0)),
            ],
            # output only advances during pass 1 -> no pass-0 writebacks.
            out_specs=pl.BlockSpec((block_rows, W), lambda p, i: (p * i, 0)),
            scratch_shapes=[
                pltpu.VMEM((acc_rows, W), jnp.float32),   # min accumulator
                pltpu.VMEM((acc_rows, W), jnp.float32),   # max accumulator
                pltpu.VMEM((1, 1), jnp.float32),          # global min
                pltpu.VMEM((1, 1), jnp.float32),          # global max
            ],
            compiler_params=pltpu.CompilerParams(
                dimension_semantics=("arbitrary", "arbitrary"),
                vmem_limit_bytes=VMEM_LIMIT_BYTES,
            ),
        )(x2, g2)

    total = rows * W
    if total == n:
        return out2.reshape(orig_shape)
    return out2.reshape(-1)[:n].reshape(orig_shape)


if __name__ == "__main__":
    std = 0.1  # GaussianNoise(std=0.1)

    # --- small input (NCHW): exercises the single-launch fast path ----------
    key = jax.random.PRNGKey(0)
    x = jax.random.normal(key, (2, 4, 16, 16), dtype=jnp.float32)

    out = jax.block_until_ready(gaussian_noise_forward(x, std, seed=0))
    assert out.shape == x.shape and out.dtype == x.dtype

    mn = float(jnp.min(x))
    mx = float(jnp.max(x))
    # output respects the global clamp bounds exactly
    assert float(jnp.min(out)) >= mn - 1e-6
    assert float(jnp.max(out)) <= mx + 1e-6

    # added noise ~ N(0, std^2) (clamping only touches a few tail values)
    delta = (out - x).reshape(-1)
    assert abs(float(jnp.mean(delta))) < 0.02
    assert 0.06 < float(jnp.std(delta)) < 0.15

    # deterministic given the same seed
    out_again = jax.block_until_ready(gaussian_noise_forward(x, std, seed=0))
    assert bool(jnp.array_equal(out, out_again))

    # --- larger input: exercises the fused grid=(2, num_blocks) path --------
    x_big = jax.random.normal(jax.random.PRNGKey(1), (2, 3, 512, 512),
                              dtype=jnp.float32)
    out_big = jax.block_until_ready(gaussian_noise_forward(x_big, std, seed=3))
    assert out_big.shape == x_big.shape and out_big.dtype == x_big.dtype
    mn_b = float(jnp.min(x_big))
    mx_b = float(jnp.max(x_big))
    assert float(jnp.min(out_big)) >= mn_b - 1e-6
    assert float(jnp.max(out_big)) <= mx_b + 1e-6
    d_big = (out_big - x_big).reshape(-1)
    assert 0.08 < float(jnp.std(d_big)) < 0.12

    print("KERNEL_OK")
</pallas_src>

<mosaic_0001>
module attributes {stable_mosaic.version = 11 : i64} {
  func.func @_fused_small_kernel(%arg0: i32, %arg1: memref<1x2048xf32, #tpu.memory_space<vmem>>, %arg2: memref<1x2048xf32, #tpu.memory_space<vmem>>, %arg3: memref<1x2048xf32, #tpu.memory_space<vmem>>) attributes {dimension_semantics = [#tpu.dimension_semantics<arbitrary>], iteration_bounds = array<i64: 1>, scalar_prefetch = 0 : i64, scratch_operands = 0 : i64, tpu.core_type = #tpu.core_type<tc>, window_params = [{pipeline_mode = #tpu.pipeline_mode<synchronous>, transform_indices = @transform_0, window_bounds = array<i64: 1, 2048>}, {pipeline_mode = #tpu.pipeline_mode<synchronous>, transform_indices = @transform_1, window_bounds = array<i64: 1, 2048>}, {pipeline_mode = #tpu.pipeline_mode<synchronous>, transform_indices = @transform_2, window_bounds = array<i64: 1, 2048>}]} {
    %c0 = arith.constant 0 : index
    %c0_0 = arith.constant 0 : index
    %0 = vector.load %arg1[%c0, %c0_0] : memref<1x2048xf32, #tpu.memory_space<vmem>>, vector<1x2048xf32>
    %1 = vector.shape_cast %0 : vector<1x2048xf32> to vector<1x1x2048xf32>
    %cst = arith.constant dense<0x7F800000> : vector<1xf32>
    %2 = vector.multi_reduction <minimumf>, %1, %cst [1, 2] : vector<1x1x2048xf32> to vector<1xf32>
    %3 = vector.shape_cast %2 : vector<1xf32> to vector<1x1x1xf32>
    %4 = vector.extract %3[0, 0, 0] : f32 from vector<1x1x1xf32>
    %5 = vector.broadcast %4 : f32 to vector<1x1xf32>
    %6 = vector.shape_cast %0 : vector<1x2048xf32> to vector<1x1x2048xf32>
    %cst_1 = arith.constant dense<0xFF800000> : vector<1xf32>
    %7 = vector.multi_reduction <maximumf>, %6, %cst_1 [1, 2] : vector<1x1x2048xf32> to vector<1xf32>
    %8 = vector.shape_cast %7 : vector<1xf32> to vector<1x1x1xf32>
    %9 = vector.extract %8[0, 0, 0] : f32 from vector<1x1x1xf32>
    %10 = vector.broadcast %9 : f32 to vector<1x1xf32>
    %c0_2 = arith.constant 0 : index
    %c0_3 = arith.constant 0 : index
    %11 = vector.load %arg2[%c0_2, %c0_3] : memref<1x2048xf32, #tpu.memory_space<vmem>>, vector<1x2048xf32>
    %cst_4 = arith.constant 1.000000e-01 : f32
    %12 = vector.broadcast %cst_4 : f32 to vector<1x2048xf32>
    %13 = arith.mulf %12, %11 : vector<1x2048xf32>
    %14 = arith.addf %0, %13 : vector<1x2048xf32>
    %15 = vector.broadcast %5 : vector<1x1xf32> to vector<1x2048xf32>
    %16 = arith.maximumf %15, %14 : vector<1x2048xf32>
    %17 = vector.broadcast %10 : vector<1x1xf32> to vector<1x2048xf32>
    %18 = arith.minimumf %17, %16 : vector<1x2048xf32>
    %c0_5 = arith.constant 0 : index
    %c0_6 = arith.constant 0 : index
    %19 = vector.load %arg3[%c0_5, %c0_6] : memref<1x2048xf32, #tpu.memory_space<vmem>>, vector<1x2048xf32>
    tpu.vector_store %arg3[%c0_5, %c0_6], %18 {strides = array<i32>} : memref<1x2048xf32, #tpu.memory_space<vmem>>, vector<1x2048xf32>,
    return
  }
  func.func @transform_0(%arg0: i32) -> (i32, i32) {
    %c0_i32 = arith.constant 0 : i32
    %c0_i32_0 = arith.constant 0 : i32
    %c0_i32_1 = arith.constant 0 : i32
    return %c0_i32, %c0_i32_0 : i32, i32
  }
  func.func @transform_1(%arg0: i32) -> (i32, i32) {
    %c0_i32 = arith.constant 0 : i32
    %c0_i32_0 = arith.constant 0 : i32
    %c0_i32_1 = arith.constant 0 : i32
    return %c0_i32, %c0_i32_0 : i32, i32
  }
  func.func @transform_2(%arg0: i32) -> (i32, i32) {
    %c0_i32 = arith.constant 0 : i32
    %c0_i32_0 = arith.constant 0 : i32
    %c0_i32_1 = arith.constant 0 : i32
    return %c0_i32, %c0_i32_0 : i32, i32
  }
}

</mosaic_0001>

<llo_original>
// kernel: tpu_custom_call.1
$region0: #{tpu_custom_call.1}
  #allocation0 [shape = 'u32[]', space=smem, size = 0x4, offset = 0x4, fixed_abs, tag = 'smem constant byte address 0x4 - core index']
  #allocation1 [shape = 'u32[144,128]{1,0:T(1,128)}', space=vmem, size = 0x12000, scoped, tag = 'internal scratch']
  %s0 = inlined_call_operand.hbm [shape: f32[1,2048], index: 0, kind: input, shape index: {}]
  %s1 = inlined_call_operand.hbm [shape: f32[1,2048], index: 1, kind: input, shape index: {}]
  %s2 = inlined_call_operand.hbm [shape: f32[1,2048], index: 2, kind: output, shape index: {}]
  %s3 = sld [smem:[#allocation0]]
  $region26: #{tpu_custom_call.1} parent=0
    _
  %s5 = ssub.s32 1, %s3
  %s6 = scalar_select 0, %s5, %s3
  $region1: #{tpu_custom_call.1} parent=0
    #allocation2 [shape = 'u8[8192]{0}', space=vmem, size = 0x2000, scoped, tag = 'input window, operand 0, single buffered']
    #allocation3 [shape = 's32[1]{0}', space=sflag, size = 0x4, scoped, tag = 'scoped memory for tpu_custom_call.1']
    #allocation4 [shape = 's32[1]{0}', space=sflag, size = 0x4, scoped, tag = 'scoped memory for tpu_custom_call.1']
    #allocation5 [shape = 'u8[8192]{0}', space=vmem, size = 0x2000, scoped, tag = 'input window, operand 1, single buffered']
    #allocation6 [shape = 's32[1]{0}', space=sflag, size = 0x4, scoped, tag = 'scoped memory for tpu_custom_call.1']
    #allocation7 [shape = 'u8[8192]{0}', space=vmem, size = 0x2000, scoped, tag = 'output window, operand 0, single buffered']
    %7 = vsyncpa [#allocation3], 0
    %8 = vsyncpa [#allocation6], 0
    %9 = vsyncpa [#allocation4], 0
    // Predicated region
    $region2: #{tpu_custom_call.1} parent=1 // pred_check
      _
    $region3: #{tpu_custom_call.1} parent=1 // pred_check_branch
      %11 = sbr.rel (0) target = $region5
    $region4: #{tpu_custom_call.1} parent=1 // pred_region
      %s13 = ssub.s32 256, 256
      %14 = vsyncadd [#allocation3], %s13
      %s16 = sshll.u32 [#allocation2], 4
      %s17 = int_to_ptr.vmem [resolvable:$true] %s16
      %19 = dma.hbm_to_vmem [thread:$0]  %s0, 256, %s17, [#allocation3]
    $region5: #{tpu_custom_call.1} parent=1 // pred_fallthru
      _
    // Predicated region
    $region6: #{tpu_custom_call.1} parent=1 // pred_check
      _
    $region7: #{tpu_custom_call.1} parent=1 // pred_check_branch
      %21 = sbr.rel (0) target = $region9
    $region8: #{tpu_custom_call.1} parent=1 // pred_region
      %s23 = ssub.s32 256, 256
      %24 = vsyncadd [#allocation6], %s23
      %s26 = sshll.u32 [#allocation5], 4
      %s27 = int_to_ptr.vmem [resolvable:$true] %s26
      %29 = dma.hbm_to_vmem [thread:$0]  %s1, 256, %s27, [#allocation6]
    $region9: #{tpu_custom_call.1} parent=1 // pred_fallthru
      _
    // Predicated region
    $region10: #{tpu_custom_call.1} parent=1 // pred_check
      _
    $region11: #{tpu_custom_call.1} parent=1 // pred_check_branch
      %31 = sbr.rel (0) target = $region13
    $region12: #{tpu_custom_call.1} parent=1 // pred_region
      %32 = dma.done [#allocation3], 256
    $region13: #{tpu_custom_call.1} parent=1 // pred_fallthru
      _
    // Predicated region
    $region14: #{tpu_custom_call.1} parent=1 // pred_check
      _
    $region15: #{tpu_custom_call.1} parent=1 // pred_check_branch
      %34 = sbr.rel (0) target = $region17
    $region16: #{tpu_custom_call.1} parent=1 // pred_region
      %35 = dma.done [#allocation6], 256
    $region17: #{tpu_custom_call.1} parent=1 // pred_fallthru
      _
    %v36 = vld [vmem:[#allocation2] sm:$0xff]
    %v37 = vld [vmem:[#allocation2 + $0x8] sm:$0xff]
    %v40 = vlaneseq
    %v41 = vshrl.u32 %v40, 7
    %v42 = vsub.s32 0, %v41
    %v43 = vrot.slane %v36, %v42
    %v44 = vlaneseq
    %v45 = vshrl.u32 %v44, 7
    %v46 = vsub.s32 1, %v45
    %v47 = vrot.slane %v36, %v46
    %v48 = vlaneseq
    %v49 = vshrl.u32 %v48, 7
    %v50 = vsub.s32 2, %v49
    %v51 = vrot.slane %v36, %v50
    %v52 = vlaneseq
    %v53 = vshrl.u32 %v52, 7
    %v54 = vsub.s32 3, %v53
    %v55 = vrot.slane %v36, %v54
    %v56 = vlaneseq
    %v57 = vshrl.u32 %v56, 7
    %v58 = vsub.s32 4, %v57
    %v59 = vrot.slane %v36, %v58
    %v60 = vlaneseq
    %v61 = vshrl.u32 %v60, 7
    %v62 = vsub.s32 5, %v61
    %v63 = vrot.slane %v36, %v62
    %v64 = vlaneseq
    %v65 = vshrl.u32 %v64, 7
    %v66 = vsub.s32 6, %v65
    %v67 = vrot.slane %v36, %v66
    %v68 = vlaneseq
    %v69 = vshrl.u32 %v68, 7
    %v70 = vsub.s32 7, %v69
    %v71 = vrot.slane %v36, %v70
    %v72 = vlaneseq
    %v73 = vshrl.u32 %v72, 7
    %v74 = vsub.s32 0, %v73
    %v75 = vrot.slane %v37, %v74
    %v76 = vlaneseq
    %v77 = vshrl.u32 %v76, 7
    %v78 = vsub.s32 1, %v77
    %v79 = vrot.slane %v37, %v78
    %v80 = vlaneseq
    %v81 = vshrl.u32 %v80, 7
    %v82 = vsub.s32 2, %v81
    %v83 = vrot.slane %v37, %v82
    %v84 = vlaneseq
    %v85 = vshrl.u32 %v84, 7
    %v86 = vsub.s32 3, %v85
    %v87 = vrot.slane %v37, %v86
    %v88 = vlaneseq
    %v89 = vshrl.u32 %v88, 7
    %v90 = vsub.s32 4, %v89
    %v91 = vrot.slane %v37, %v90
    %v92 = vlaneseq
    %v93 = vshrl.u32 %v92, 7
    %v94 = vsub.s32 5, %v93
    %v95 = vrot.slane %v37, %v94
    %v96 = vlaneseq
    %v97 = vshrl.u32 %v96, 7
    %v98 = vsub.s32 6, %v97
    %v99 = vrot.slane %v37, %v98
    %v100 = vlaneseq
    %v101 = vshrl.u32 %v100, 7
    %v102 = vsub.s32 7, %v101
    %v103 = vrot.slane %v37, %v102
    %vm120 = vcmask 1040384
    %v121 = vsel %vm120, %v43, inf
    %v122 = vsel %vm120, %v47, inf
    %v123 = vsel %vm120, %v51, inf
    %v124 = vsel %vm120, %v55, inf
    %v125 = vsel %vm120, %v59, inf
    %v126 = vmin.f32 %v121, %v125
    %v127 = vsel %vm120, %v63, inf
    %v128 = vmin.f32 %v122, %v127
    %v129 = vsel %vm120, %v67, inf
    %v130 = vmin.f32 %v123, %v129
    %v131 = vsel %vm120, %v71, inf
    %v132 = vmin.f32 %v124, %v131
    %v133 = vsel %vm120, %v75, inf
    %v134 = vmin.f32 %v126, %v133
    %v135 = vsel %vm120, %v79, inf
    %v136 = vmin.f32 %v128, %v135
    %v137 = vsel %vm120, %v83, inf
    %v138 = vmin.f32 %v130, %v137
    %v139 = vsel %vm120, %v87, inf
    %v140 = vmin.f32 %v132, %v139
    %v141 = vsel %vm120, %v91, inf
    %v142 = vmin.f32 %v134, %v141
    %v143 = vsel %vm120, %v95, inf
    %v144 = vmin.f32 %v136, %v143
    %v145 = vsel %vm120, %v99, inf
    %v146 = vmin.f32 %v138, %v145
    %v147 = vsel %vm120, %v103, inf
    %v148 = vmin.f32 %v140, %v147
    %v149 = vmin.f32 %v142, %v144
    %v150 = vmin.f32 %v146, %v148
    %v151 = vmin.f32 %v149, %v150
    %152 = vmin.xlane.f32.xlu0 %v151
    %v153 = vpop.xlane.xlu0 %152
    %v154 = vrot.slane %v153, 4
    %v155 = vmin.f32 %v153, %v154
    %v156 = vrot.slane %v155, 2
    %v157 = vmin.f32 %v155, %v156
    %v158 = vrot.slane %v157, 1
    %v159 = vmin.f32 %v157, %v158
    %s160 = vtos %v159
    %v161 = vsel %vm120, %v43, -inf
    %v162 = vsel %vm120, %v47, -inf
    %v163 = vsel %vm120, %v51, -inf
    %v164 = vsel %vm120, %v55, -inf
    %v165 = vsel %vm120, %v59, -inf
    %v166 = vmax.f32 %v161, %v165
    %v167 = vsel %vm120, %v63, -inf
    %v168 = vmax.f32 %v162, %v167
    %v169 = vsel %vm120, %v67, -inf
    %v170 = vmax.f32 %v163, %v169
    %v171 = vsel %vm120, %v71, -inf
    %v172 = vmax.f32 %v164, %v171
    %v173 = vsel %vm120, %v75, -inf
    %v174 = vmax.f32 %v166, %v173
    %v175 = vsel %vm120, %v79, -inf
    %v176 = vmax.f32 %v168, %v175
    %v177 = vsel %vm120, %v83, -inf
    %v178 = vmax.f32 %v170, %v177
    %v179 = vsel %vm120, %v87, -inf
    %v180 = vmax.f32 %v172, %v179
    %v181 = vsel %vm120, %v91, -inf
    %v182 = vmax.f32 %v174, %v181
    %v183 = vsel %vm120, %v95, -inf
    %v184 = vmax.f32 %v176, %v183
    %v185 = vsel %vm120, %v99, -inf
    %v186 = vmax.f32 %v178, %v185
    %v187 = vsel %vm120, %v103, -inf
    %v188 = vmax.f32 %v180, %v187
    %v189 = vmax.f32 %v182, %v184
    %v190 = vmax.f32 %v186, %v188
    %v191 = vmax.f32 %v189, %v190
    %192 = vmax.xlane.f32.xlu0 %v191
    %v193 = vpop.xlane.xlu0 %192
    %v194 = vrot.slane %v193, 4
    %v195 = vmax.f32 %v193, %v194
    %v196 = vrot.slane %v195, 2
    %v197 = vmax.f32 %v195, %v196
    %v198 = vrot.slane %v197, 1
    %v199 = vmax.f32 %v197, %v198
    %s200 = vtos %v199
    %v201 = vld [vmem:[#allocation5] sm:$0xff]
    %v202 = vld [vmem:[#allocation5 + $0x8] sm:$0xff]
    %v203 = vmul.f32 %v201, 0.1
    %v204 = vmul.f32 %v202, 0.1
    %v205 = vadd.f32 %v36, %v203
    %v206 = vadd.f32 %v37, %v204
    %v207 = vstv %s160
    %v208 = vmax.f32 %v207, %v205
    %v209 = vmax.f32 %v207, %v206
    %v210 = vstv %s200
    %v211 = vmin.f32 %v210, %v208
    %v212 = vmin.f32 %v210, %v209
    %213 = vst [vmem:[#allocation7] sm:$0xff] %v211
    %214 = vst [vmem:[#allocation7 + $0x8] sm:$0xff] %v212
    // Predicated region
    $region18: #{tpu_custom_call.1} parent=1 // pred_check
      _
    $region19: #{tpu_custom_call.1} parent=1 // pred_check_branch
      %216 = sbr.rel (0) target = $region21
    $region20: #{tpu_custom_call.1} parent=1 // pred_region
      %s218 = ssub.s32 256, 256
      %219 = vsyncadd [#allocation4], %s218
      %s221 = sshll.u32 [#allocation7], 4
      %s222 = int_to_ptr.vmem [resolvable:$true] %s221
      %224 = dma.vmem_to_hbm [thread:$0]  %s222, 256, %s2, [#allocation4]
    $region21: #{tpu_custom_call.1} parent=1 // pred_fallthru
      _
    // Predicated region
    $region22: #{tpu_custom_call.1} parent=1 // pred_check
      _
    $region23: #{tpu_custom_call.1} parent=1 // pred_check_branch
      %226 = sbr.rel (0) target = $region25
    $region24: #{tpu_custom_call.1} parent=1 // pred_region
      %227 = dma.done [#allocation4], 256
    $region25: #{tpu_custom_call.1} parent=1 // pred_fallthru
      _
    %228 = vsyncpa [#allocation3], 1
    %229 = vsyncpa [#allocation6], 1
    %230 = vsyncpa [#allocation4], 1

</llo_original>
